<compile_context>
chip_gen: v6e
topology: v6e:2x2x1
jax: 0.10.0
libtpu: 0.0.40
codegen_flags: <defaults>
</compile_context>

<pallas_src>
import numpy as np

import jax
import jax.numpy as jnp
from jax.experimental import pallas as pl
from jax.experimental.pallas import tpu as pltpu


def _round_up(x, m):
    return (x + m - 1) // m * m


# ----------------------------------------------------------------------------
# pltpu.roll convention probe (cached): True iff pltpu.roll == jnp.roll
# (element i -> i+shift).  Keeps the tap-shift math robust to either sign
# convention of the underlying dynamic-rotate lowering.  Must be primed
# eagerly (outside jit) before tracing the forward pass.
# ----------------------------------------------------------------------------
_ROLL_FWD = None


def _roll_is_forward():
    global _ROLL_FWD
    if _ROLL_FWD is None:
        def k(x_ref, o_ref):
            o_ref[...] = pltpu.roll(x_ref[...], 1, axis=1)

        x = jnp.arange(8 * 128, dtype=jnp.float32).reshape(8, 128)
        y = pl.pallas_call(
            k,
            out_shape=jax.ShapeDtypeStruct((8, 128), jnp.float32),
            grid=(1,),
            in_specs=[pl.BlockSpec((8, 128), lambda i: (0, 0))],
            out_specs=pl.BlockSpec((8, 128), lambda i: (0, 0)),
        )(x)
        _ROLL_FWD = bool(jax.device_get(y)[0, 1] == 0.0)
    return _ROLL_FWD


# ----------------------------------------------------------------------------
# Geometry of the flat, zero-padded volume layout.
#   flat index of padded coord (z', y', x') = z'*Hp*Wp + y'*Wp + x'
#   valid output voxel (z, y, x) lives at base index s = z*Hp*Wp + y*Wp + x
# ----------------------------------------------------------------------------
def _geometry(D, H, W, dil):
    p = dil
    Dp, Hp, Wp = D + 2 * p, H + 2 * p, W + 2 * p
    hw = Hp * Wp
    l_base = D * hw                       # covers every valid base index
    off0 = p * (hw + Wp + 1)              # flat offset of the centre tap
    l_full = _round_up(l_base + 2 * off0, 128)   # multiple of 128 -> lane-dense
    # zero-padding semantics of the circular rolls rely on these invariants:
    assert l_full >= l_base + 2 * off0, "roll wrap would hit valid lanes"
    assert l_full >= Dp * Hp * Wp, "padded volume must fit in the lane axis"
    assert l_full % 128 == 0
    return dict(p=p, Dp=Dp, Hp=Hp, Wp=Wp, hw=hw,
                l_base=l_base, off0=off0, l_full=l_full)


# ----------------------------------------------------------------------------
# Fused per-layer Pallas kernel:
#   conv1 -> InstanceNorm -> ReLU -> conv2 -> InstanceNorm -> ReLU -> [pool]
# ----------------------------------------------------------------------------
def _build_layer_call(N, cin, cout, D, H, W, dil, pool):
    g = _geometry(D, H, W, dil)
    L = g["l_full"]
    hw, Wp, off0 = g["hw"], g["Wp"], g["off0"]

    taps = [dil * (kd * hw + kh * Wp + kw)
            for kd in range(3) for kh in range(3) for kw in range(3)]
    inv_s = 1.0 / float(D * H * W)
    fwd = _roll_is_forward()

    def shifted(v, off):
        """Return r with r[:, s] = v[:, (s + off) % L] (static lane shift)."""
        off = off % L
        if off == 0:
            return v
        amt = (L - off) % L if fwd else off
        return pltpu.roll(v, amt, axis=1)

    def inorm_relu(acc, maskb):
        # InstanceNorm3d(affine=False, eps=1e-5) over the D*H*W valid voxels
        # (per sample, per channel) + ReLU.  Masked lanes come out exactly 0
        # (dev is 0 there), which conv2's wrap-around and the pool rely on.
        am = acc * maskb
        mean = jnp.sum(am, axis=-1, keepdims=True) * inv_s
        dev = (acc - mean) * maskb
        var = jnp.sum(dev * dev, axis=-1, keepdims=True) * inv_s
        return jnp.maximum(dev * jax.lax.rsqrt(var + 1e-5), 0.0)

    def kernel(x_ref, w1_ref, w2_ref, mask_ref, *rest):
        if pool:
            out_ref, pool_ref, im1_ref, im2_ref = rest
        else:
            out_ref, im1_ref, im2_ref = rest
            pool_ref = None

        # mask broadcast hoisted once (JAX does not CSE broadcast_in_dim).
        maskb = jnp.broadcast_to(mask_ref[...], (cout, L))   # (cout, L) f32

        # ---- conv1: 27 bf16 lane-rolls into the im2col scratch, ONE dot ----
        xin = x_ref[0]                                        # (cin, L) bf16
        for t, off in enumerate(taps):
            im1_ref[t * cin:(t + 1) * cin, :] = shifted(xin, off)
        acc1 = jnp.dot(w1_ref[...], im1_ref[...],
                       preferred_element_type=jnp.float32)    # (cout, L) f32
        y1 = inorm_relu(acc1, maskb)
        y1b = y1.astype(jnp.bfloat16)                         # single downcast

        # ---- conv2: intermediate stays in VMEM/vregs, same folded dot ----
        for t, off in enumerate(taps):
            im2_ref[t * cout:(t + 1) * cout, :] = shifted(y1b, off - off0)
        acc2 = jnp.dot(w2_ref[...], im2_ref[...],
                       preferred_element_type=jnp.float32)
        y2b = inorm_relu(acc2, maskb).astype(jnp.bfloat16)
        out_ref[0] = y2b

        # ---- fused MaxPool3d(2,2): hierarchical 3-roll / 3-max on bf16 ----
        if pool:
            m = jnp.maximum(y2b, shifted(y2b, 1))             # +x
            m = jnp.maximum(m, shifted(m, Wp))                # +y
            m = jnp.maximum(m, shifted(m, hw))                # +z
            pool_ref[0] = m

    x_spec = pl.BlockSpec((1, cin, L), lambda n: (n, 0, 0))
    w1_spec = pl.BlockSpec((cout, 27 * cin), lambda n: (0, 0))
    w2_spec = pl.BlockSpec((cout, 27 * cout), lambda n: (0, 0))
    m_spec = pl.BlockSpec((1, L), lambda n: (0, 0))
    full_spec = pl.BlockSpec((1, cout, L), lambda n: (n, 0, 0))

    if pool:
        out_shape = (jax.ShapeDtypeStruct((N, cout, L), jnp.bfloat16),
                     jax.ShapeDtypeStruct((N, cout, L), jnp.bfloat16))
        out_specs = (full_spec, full_spec)
    else:
        out_shape = jax.ShapeDtypeStruct((N, cout, L), jnp.bfloat16)
        out_specs = full_spec

    call = pl.pallas_call(
        kernel,
        out_shape=out_shape,
        grid=(N,),
        in_specs=[x_spec, w1_spec, w2_spec, m_spec],
        out_specs=out_specs,
        scratch_shapes=[pltpu.VMEM((27 * cin, L), jnp.bfloat16),
                        pltpu.VMEM((27 * cout, L), jnp.bfloat16)],
        compiler_params=pltpu.CompilerParams(
            dimension_semantics=("parallel",),
            vmem_limit_bytes=32 * 1024 * 1024),
    )

    # host-side constant: 1.0 on valid output base indices, 0.0 elsewhere.
    m3 = np.zeros((D, g["Hp"], g["Wp"]), np.float32)
    m3[:, :H, :W] = 1.0
    mflat = np.zeros((1, L), np.float32)
    mflat[0, :g["l_base"]] = m3.reshape(-1)
    return call, g, jnp.asarray(mflat)


# ----------------------------------------------------------------------------
# Wrapper glue (cheap XLA ops on <= 0.5 MB tensors): NCDHW <-> flat layout.
# ----------------------------------------------------------------------------
def _prep_input(x5, g):
    """(N, C, D, H, W) -> (N, C, L_full) bf16 flat zero-padded volume."""
    p = g["p"]
    xp = jnp.pad(x5, ((0, 0), (0, 0), (p, p), (p, p), (p, p)))
    flat = xp.reshape(xp.shape[0], xp.shape[1], -1)
    flat = jnp.pad(flat, ((0, 0), (0, 0), (0, g["l_full"] - flat.shape[-1])))
    return flat.astype(jnp.bfloat16)


def deeplab_encoder_forward(x_ncdhw, params):
    """Mirrors DeepLabEncoder.forward (eval mode).  NCDHW in / NCDHW out."""
    N, cin, D, H, W = x_ncdhw.shape
    num_layers = len(params)
    dilations = [1 if i < 3 else 2 ** (i - 3) for i in range(num_layers)]

    states = []
    out5 = None
    x5 = x_ncdhw
    for i, (w1, w2) in enumerate(params):
        cout = w1.shape[0]
        dil = dilations[i]
        do_state = i < num_layers - 1
        do_pool = do_state and i < 4
        if do_pool:
            assert D % 2 == 0 and H % 2 == 0 and W % 2 == 0

        call, g, mask = _build_layer_call(N, cin, cout, D, H, W, dil, do_pool)
        xflat = _prep_input(x5, g)
        if do_pool:
            o_full, o_pool = call(xflat, w1, w2, mask)
        else:
            o_full = call(xflat, w1, w2, mask)
            o_pool = None

        lb, Hp, Wp = g["l_base"], g["Hp"], g["Wp"]
        full5 = o_full[:, :, :lb].reshape(N, cout, D, Hp, Wp)[:, :, :, :H, :W]
        if do_state:
            states.append(full5)                              # NCDHW, bf16
            if do_pool:
                # compact the (already max-pooled) lanes: tiny strided slice.
                x5 = o_pool[:, :, :lb].reshape(N, cout, D, Hp, Wp)[
                    :, :, 0:D:2, 0:H:2, 0:W:2]
                D, H, W = D // 2, H // 2, W // 2
            else:
                x5 = full5
        else:
            out5 = full5
        cin = cout
    return out5, states


# ----------------------------------------------------------------------------
# Parameters: lane-dense (Cout, 27*Cin) bf16 slabs, column = tap*Cin + cin.
# (conv bias dropped: cancelled exactly by InstanceNorm(affine=False).)
# ----------------------------------------------------------------------------
def init_params(key, in_channels, feature_list, subunits=2):
    params = []
    cprev = in_channels
    for cout in feature_list:
        layer = []
        for _ in range(subunits):
            key, kw = jax.random.split(key)
            fan_in = 27 * cprev
            w = jax.random.normal(kw, (cout, 27 * cprev), jnp.float32)
            w = w * (1.0 / np.sqrt(fan_in))
            layer.append(w.astype(jnp.bfloat16))
            cprev = cout
        params.append(tuple(layer))
    return params


# ----------------------------------------------------------------------------
# Pure-JAX f32 reference of the same forward pass (validation only).
# ----------------------------------------------------------------------------
def _ref_conv_in_relu(x, w_flat, dil):
    cout = w_flat.shape[0]
    cin = w_flat.shape[1] // 27
    w = w_flat.astype(jnp.float32).reshape(cout, 3, 3, 3, cin)
    w = jnp.transpose(w, (0, 4, 1, 2, 3))                  # (O, I, kd, kh, kw)
    y = jax.lax.conv_general_dilated(
        x.astype(jnp.float32), w, window_strides=(1, 1, 1),
        padding=[(dil, dil)] * 3, rhs_dilation=(dil, dil, dil),
        dimension_numbers=("NCDHW", "OIDHW", "NCDHW"),
        precision=jax.lax.Precision.HIGHEST)
    mean = jnp.mean(y, axis=(2, 3, 4), keepdims=True)
    var = jnp.mean((y - mean) ** 2, axis=(2, 3, 4), keepdims=True)
    return jnp.maximum((y - mean) * jax.lax.rsqrt(var + 1e-5), 0.0)


def reference_encoder(x, params):
    num_layers = len(params)
    dilations = [1 if i < 3 else 2 ** (i - 3) for i in range(num_layers)]
    states = []
    for i, (w1, w2) in enumerate(params):
        x = _ref_conv_in_relu(x, w1, dilations[i])
        x = _ref_conv_in_relu(x, w2, dilations[i])
        if i < num_layers - 1:
            states.append(x)
            if i < 4:
                x = jax.lax.reduce_window(
                    x, -jnp.inf, jax.lax.max,
                    (1, 1, 2, 2, 2), (1, 1, 2, 2, 2), "VALID")
    return x, states


if __name__ == "__main__":
    key = jax.random.PRNGKey(0)
    k_x, k_p = jax.random.split(key)

    in_channels = 2
    feature_list = [4, 8, 16, 32, 32]       # 5 layers -> dilation 2 at layer 4
    N, D, H, W = 2, 16, 16, 16

    x = jax.random.normal(k_x, (N, in_channels, D, H, W), jnp.float32)  # NCDHW
    params = init_params(k_p, in_channels, feature_list)

    _roll_is_forward()                      # prime the roll-convention probe

    fwd = jax.jit(deeplab_encoder_forward)
    out, states = fwd(x, params)
    out = jax.block_until_ready(out)
    states = [jax.block_until_ready(s) for s in states]

    assert out.shape == (N, feature_list[-1], 1, 1, 1), out.shape
    expected_state_shapes = [
        (N, 4, 16, 16, 16), (N, 8, 8, 8, 8), (N, 16, 4, 4, 4), (N, 32, 2, 2, 2)]
    assert [tuple(s.shape) for s in states] == expected_state_shapes

    # Numerical check vs the pure-JAX f32 reference (tolerances cover the
    # deliberate bf16 MXU operands / bf16 activation storage in the Pallas
    # path; deeper layers accumulate more bf16 error).
    _ref_out, ref_states = reference_encoder(x, params)
    for k, atol in [(0, 0.10), (1, 0.15), (2, 0.25)]:
        np.testing.assert_allclose(
            np.asarray(states[k].astype(jnp.float32)),
            np.asarray(ref_states[k]), atol=atol, rtol=0)

    print("KERNEL_OK")
</pallas_src>

<mosaic_0001>
module attributes {stable_mosaic.version = 11 : i64} {
  func.func @k(%arg0: i32, %arg1: memref<8x128xf32, #tpu.memory_space<vmem>>, %arg2: memref<8x128xf32, #tpu.memory_space<vmem>>) attributes {dimension_semantics = [#tpu.dimension_semantics<arbitrary>], iteration_bounds = array<i64: 1>, scalar_prefetch = 0 : i64, scratch_operands = 0 : i64, tpu.core_type = #tpu.core_type<tc>, window_params = [{pipeline_mode = #tpu.pipeline_mode<synchronous>, transform_indices = @transform_0, window_bounds = array<i64: 8, 128>}, {pipeline_mode = #tpu.pipeline_mode<synchronous>, transform_indices = @transform_1, window_bounds = array<i64: 8, 128>}]} {
    %c0 = arith.constant 0 : index
    %c0_0 = arith.constant 0 : index
    %0 = vector.load %arg1[%c0, %c0_0] : memref<8x128xf32, #tpu.memory_space<vmem>>, vector<8x128xf32>
    %c1_i32 = arith.constant 1 : i32
    %1 = tpu.dynamic_rotate %0 by %c1_i32 dim 1 : vector<8x128xf32>, i32 -> vector<8x128xf32>
    %c0_1 = arith.constant 0 : index
    %c0_2 = arith.constant 0 : index
    %2 = vector.load %arg2[%c0_1, %c0_2] : memref<8x128xf32, #tpu.memory_space<vmem>>, vector<8x128xf32>
    tpu.vector_store %arg2[%c0_1, %c0_2], %1 {strides = array<i32>} : memref<8x128xf32, #tpu.memory_space<vmem>>, vector<8x128xf32>,
    return
  }
  func.func @transform_0(%arg0: i32) -> (i32, i32) {
    %c0_i32 = arith.constant 0 : i32
    %c0_i32_0 = arith.constant 0 : i32
    %c0_i32_1 = arith.constant 0 : i32
    return %c0_i32, %c0_i32_0 : i32, i32
  }
  func.func @transform_1(%arg0: i32) -> (i32, i32) {
    %c0_i32 = arith.constant 0 : i32
    %c0_i32_0 = arith.constant 0 : i32
    %c0_i32_1 = arith.constant 0 : i32
    return %c0_i32, %c0_i32_0 : i32, i32
  }
}

</mosaic_0001>

<llo_original>
// kernel: tpu_custom_call.1
$region0: #{tpu_custom_call.1}
  #allocation0 [shape = 'u32[]', space=smem, size = 0x4, offset = 0x4, fixed_abs, tag = 'smem constant byte address 0x4 - core index']
  #allocation1 [shape = 'u32[144,128]{1,0:T(1,128)}', space=vmem, size = 0x12000, scoped, tag = 'internal scratch']
  %s0 = inlined_call_operand.hbm [shape: f32[8,128], index: 0, kind: input, shape index: {}]
  %s1 = inlined_call_operand.hbm [shape: f32[8,128], index: 1, kind: output, shape index: {}]
  %s2 = sld [smem:[#allocation0]]
  $region18: #{tpu_custom_call.1} parent=0
    _
  %s4 = ssub.s32 1, %s2
  %s5 = scalar_select 0, %s4, %s2
  $region1: #{tpu_custom_call.1} parent=0
    #allocation2 [shape = 'u8[4096]{0}', space=vmem, size = 0x1000, scoped, tag = 'input window, operand 0, single buffered']
    #allocation3 [shape = 's32[1]{0}', space=sflag, size = 0x4, scoped, tag = 'scoped memory for tpu_custom_call.1']
    #allocation4 [shape = 's32[1]{0}', space=sflag, size = 0x4, scoped, tag = 'scoped memory for tpu_custom_call.1']
    #allocation5 [shape = 'u8[4096]{0}', space=vmem, size = 0x1000, scoped, tag = 'output window, operand 0, single buffered']
    %6 = vsyncpa [#allocation3], 0
    %7 = vsyncpa [#allocation4], 0
    // Predicated region
    $region2: #{tpu_custom_call.1} parent=1 // pred_check
      _
    $region3: #{tpu_custom_call.1} parent=1 // pred_check_branch
      %9 = sbr.rel (0) target = $region5
    $region4: #{tpu_custom_call.1} parent=1 // pred_region
      %s11 = ssub.s32 128, 128
      %12 = vsyncadd [#allocation3], %s11
      %s14 = sshll.u32 [#allocation2], 4
      %s15 = int_to_ptr.vmem [resolvable:$true] %s14
      %17 = dma.hbm_to_vmem [thread:$0]  %s0, 128, %s15, [#allocation3]
    $region5: #{tpu_custom_call.1} parent=1 // pred_fallthru
      _
    // Predicated region
    $region6: #{tpu_custom_call.1} parent=1 // pred_check
      _
    $region7: #{tpu_custom_call.1} parent=1 // pred_check_branch
      %19 = sbr.rel (0) target = $region9
    $region8: #{tpu_custom_call.1} parent=1 // pred_region
      %20 = dma.done [#allocation3], 128
    $region9: #{tpu_custom_call.1} parent=1 // pred_fallthru
      _
    %v21 = vld [vmem:[#allocation2] sm:$0xff]
    %22 = vrot.lane.b32.xlu0 %v21, 1
    %v23 = vpop.permute.xlu0 %22
    %24 = vst [vmem:[#allocation5] sm:$0xff] %v23
    // Predicated region
    $region10: #{tpu_custom_call.1} parent=1 // pred_check
      _
    $region11: #{tpu_custom_call.1} parent=1 // pred_check_branch
      %26 = sbr.rel (0) target = $region13
    $region12: #{tpu_custom_call.1} parent=1 // pred_region
      %s28 = ssub.s32 128, 128
      %29 = vsyncadd [#allocation4], %s28
      %s31 = sshll.u32 [#allocation5], 4
      %s32 = int_to_ptr.vmem [resolvable:$true] %s31
      %34 = dma.vmem_to_hbm [thread:$0]  %s32, 128, %s1, [#allocation4]
    $region13: #{tpu_custom_call.1} parent=1 // pred_fallthru
      _
    // Predicated region
    $region14: #{tpu_custom_call.1} parent=1 // pred_check
      _
    $region15: #{tpu_custom_call.1} parent=1 // pred_check_branch
      %36 = sbr.rel (0) target = $region17
    $region16: #{tpu_custom_call.1} parent=1 // pred_region
      %37 = dma.done [#allocation4], 128
    $region17: #{tpu_custom_call.1} parent=1 // pred_fallthru
      _
    %38 = vsyncpa [#allocation3], 1
    %39 = vsyncpa [#allocation4], 1

</llo_original>
